<compile_context>
chip_gen: v5e
topology: v5e:2x2
jax: 0.10.0
libtpu: 0.0.40
codegen_flags: <defaults>
</compile_context>

<pallas_src>
import jax
import jax.numpy as jnp
from jax.experimental import pallas as pl
from jax.experimental.pallas import tpu as pltpu


def lstm_head_kernel(x_ref, wih_ref, whh_ref, bg_ref, whead_ref, bhead_ref,
                     out_ref):
    """Whole LSTM + fused output heads in one kernel invocation.

    x_ref     : (T*B, A)   action sequence, flattened over time
    wih_ref   : (A, 4H)    pre-transposed input weights
    whh_ref   : (H, 4H)    pre-transposed recurrent weights
    bg_ref    : (1, 4H)    b_ih + b_hh
    whead_ref : (H, 2A)    [W_mu.T | W_logstd.T]
    bhead_ref : (1, 2A)    [b_mu   | b_logstd  ]
    out_ref   : (B, 2A)    [mu     | sigma     ]
    """
    TB, _ = x_ref.shape
    H = whh_ref.shape[0]
    B = out_ref.shape[0]
    two_a = out_ref.shape[1]
    A_out = two_a // 2
    T = TB // B

    # One batched input projection for all timesteps (off the recurrent
    # critical path): (T*B, A) @ (A, 4H) + bias -> (T*B, 4H).
    gx_all = (jnp.dot(x_ref[...], wih_ref[...],
                      preferred_element_type=jnp.float32)
              + bg_ref[...])

    whh = whh_ref[...]                              # (H, 4H), loaded once
    h = jnp.zeros((B, H), jnp.float32)
    c = jnp.zeros((B, H), jnp.float32)

    # T is small and static -> fully unrolled loop with static slices; the only
    # loop-carried dependency is h/c -> matmul -> gates -> h/c.
    for t in range(T):
        gates = (gx_all[t * B:(t + 1) * B, :]
                 + jnp.dot(h, whh, preferred_element_type=jnp.float32))
        # Whole-vreg nonlinearities (EUP is otherwise idle), then static slices.
        sg = jax.nn.sigmoid(gates)                  # (B, 4H)
        tg = jnp.tanh(gates)                        # (B, 4H)
        i_g = sg[:, 0 * H:1 * H]
        f_g = sg[:, 1 * H:2 * H]
        g_g = tg[:, 2 * H:3 * H]
        o_g = sg[:, 3 * H:4 * H]
        c = f_g * c + i_g * g_g
        h = o_g * jnp.tanh(c)

    # Fused output heads: one MXU op, one bias add, one whole-vreg exp + blend.
    head = (jnp.dot(h, whead_ref[...], preferred_element_type=jnp.float32)
            + bhead_ref[...])                       # (B, 2A) = [mu_pre | logstd]
    lane = jax.lax.broadcasted_iota(jnp.int32, head.shape, dimension=1)
    out_ref[...] = jnp.where(lane < A_out, head, jnp.exp(head))


def latent_action_lstm_forward(actions, params):
    """actions: f32[T, B, A]. Returns (mu, sigma) of the output Normal, each f32[B, A]."""
    T, B, A = actions.shape
    H = params["w_hh"].shape[1]

    # One-time layout plumbing in the wrapper (pre-transposed / fused weights).
    x2d = actions.reshape(T * B, A)
    wih_t = params["w_ih"].T                                      # (A, 4H)
    whh_t = params["w_hh"].T                                      # (H, 4H)
    b_gates = (params["b_ih"] + params["b_hh"]).reshape(1, 4 * H)  # (1, 4H)
    w_head_t = jnp.concatenate([params["w_mu"].T, params["w_ls"].T], axis=1)  # (H, 2A)
    b_head = jnp.concatenate([params["b_mu"], params["b_ls"]]).reshape(1, 2 * A)

    out = pl.pallas_call(
        lstm_head_kernel,
        out_shape=jax.ShapeDtypeStruct((B, 2 * A), jnp.float32),
        grid_spec=pltpu.PrefetchScalarGridSpec(
            num_scalar_prefetch=0,
            grid=(1,),                      # single invocation; recurrence is in-kernel
            in_specs=[
                pl.BlockSpec((T * B, A), lambda i: (0, 0)),       # actions (flattened)
                pl.BlockSpec((A, 4 * H), lambda i: (0, 0)),       # W_ih^T
                pl.BlockSpec((H, 4 * H), lambda i: (0, 0)),       # W_hh^T
                pl.BlockSpec((1, 4 * H), lambda i: (0, 0)),       # b_ih + b_hh
                pl.BlockSpec((H, 2 * A), lambda i: (0, 0)),       # [W_mu^T | W_ls^T]
                pl.BlockSpec((1, 2 * A), lambda i: (0, 0)),       # [b_mu | b_ls]
            ],
            out_specs=pl.BlockSpec((B, 2 * A), lambda i: (0, 0)),  # [mu | sigma]
        ),
        compiler_params=pltpu.CompilerParams(
            dimension_semantics=("arbitrary",)),
    )(x2d, wih_t, whh_t, b_gates, w_head_t, b_head)

    mu = out[:, :A]
    sigma = out[:, A:]
    return mu, sigma


def reference_forward(actions, params):
    """Plain-JAX reference (lax.scan) for validation."""
    T, B, A = actions.shape
    H = params["w_hh"].shape[1]
    b = params["b_ih"] + params["b_hh"]

    def step(carry, x_t):
        h, c = carry
        gates = x_t @ params["w_ih"].T + h @ params["w_hh"].T + b
        i = jax.nn.sigmoid(gates[:, 0 * H:1 * H])
        f = jax.nn.sigmoid(gates[:, 1 * H:2 * H])
        g = jnp.tanh(gates[:, 2 * H:3 * H])
        o = jax.nn.sigmoid(gates[:, 3 * H:4 * H])
        c = f * c + i * g
        h = o * jnp.tanh(c)
        return (h, c), h

    h0 = jnp.zeros((B, H), jnp.float32)
    c0 = jnp.zeros((B, H), jnp.float32)
    (_, _), hs = jax.lax.scan(step, (h0, c0), actions)
    h_last = hs[-1]
    mu = h_last @ params["w_mu"].T + params["b_mu"]
    logstd = h_last @ params["w_ls"].T + params["b_ls"]
    return mu, jnp.exp(logstd)


def init_params(key, action_dims, hidden_dims):
    """Deterministic, PyTorch-style uniform(-1/sqrt(fan), 1/sqrt(fan)) init."""
    ks = jax.random.split(key, 10)
    k_lstm = 1.0 / jnp.sqrt(hidden_dims)
    k_lin = 1.0 / jnp.sqrt(hidden_dims)

    def u(k, shape, bound):
        return jax.random.uniform(k, shape, jnp.float32, -bound, bound)

    return {
        "w_ih": u(ks[0], (4 * hidden_dims, action_dims), k_lstm),
        "w_hh": u(ks[1], (4 * hidden_dims, hidden_dims), k_lstm),
        "b_ih": u(ks[2], (4 * hidden_dims,), k_lstm),
        "b_hh": u(ks[3], (4 * hidden_dims,), k_lstm),
        "w_mu": u(ks[4], (action_dims, hidden_dims), k_lin),
        "b_mu": u(ks[5], (action_dims,), k_lin),
        "w_ls": u(ks[6], (action_dims, hidden_dims), k_lin),
        "b_ls": u(ks[7], (action_dims,), k_lin),
    }


if __name__ == "__main__":
    T, B = 8, 2           # seq_len, batch
    action_dims = 8
    hidden_dims = 32
    # (input_dims / latent_dims belong to the unused/broken encoder branch)

    key = jax.random.PRNGKey(0)
    k_x, k_p = jax.random.split(key)
    actions = jax.random.normal(k_x, (T, B, action_dims), jnp.float32)
    params = init_params(k_p, action_dims, hidden_dims)

    mu, sigma = jax.jit(latent_action_lstm_forward)(actions, params)
    jax.block_until_ready((mu, sigma))

    mu_ref, sigma_ref = reference_forward(actions, params)
    assert jnp.allclose(mu, mu_ref, atol=1e-4, rtol=1e-4), "mu mismatch"
    assert jnp.allclose(sigma, sigma_ref, atol=1e-4, rtol=1e-4), "sigma mismatch"

    print("KERNEL_OK")
</pallas_src>

<mosaic_0001>
module attributes {stable_mosaic.version = 11 : i64} {
  func.func @lstm_head_kernel(%arg0: i32, %arg1: memref<16x8xf32, #tpu.memory_space<vmem>>, %arg2: memref<8x128xf32, #tpu.memory_space<vmem>>, %arg3: memref<32x128xf32, #tpu.memory_space<vmem>>, %arg4: memref<1x128xf32, #tpu.memory_space<vmem>>, %arg5: memref<32x16xf32, #tpu.memory_space<vmem>>, %arg6: memref<1x16xf32, #tpu.memory_space<vmem>>, %arg7: memref<2x16xf32, #tpu.memory_space<vmem>>) attributes {dimension_semantics = [#tpu.dimension_semantics<arbitrary>], iteration_bounds = array<i64: 1>, scalar_prefetch = 0 : i64, scratch_operands = 0 : i64, tpu.core_type = #tpu.core_type<tc>, window_params = [{pipeline_mode = #tpu.pipeline_mode<synchronous>, transform_indices = @transform_0, window_bounds = array<i64: 16, 8>}, {pipeline_mode = #tpu.pipeline_mode<synchronous>, transform_indices = @transform_1, window_bounds = array<i64: 8, 128>}, {pipeline_mode = #tpu.pipeline_mode<synchronous>, transform_indices = @transform_2, window_bounds = array<i64: 32, 128>}, {pipeline_mode = #tpu.pipeline_mode<synchronous>, transform_indices = @transform_3, window_bounds = array<i64: 1, 128>}, {pipeline_mode = #tpu.pipeline_mode<synchronous>, transform_indices = @transform_4, window_bounds = array<i64: 32, 16>}, {pipeline_mode = #tpu.pipeline_mode<synchronous>, transform_indices = @transform_5, window_bounds = array<i64: 1, 16>}, {pipeline_mode = #tpu.pipeline_mode<synchronous>, transform_indices = @transform_6, window_bounds = array<i64: 2, 16>}]} {
    %c0 = arith.constant 0 : index
    %c0_0 = arith.constant 0 : index
    %0 = vector.load %arg1[%c0, %c0_0] : memref<16x8xf32, #tpu.memory_space<vmem>>, vector<16x8xf32>
    %c0_1 = arith.constant 0 : index
    %c0_2 = arith.constant 0 : index
    %1 = vector.load %arg2[%c0_1, %c0_2] : memref<8x128xf32, #tpu.memory_space<vmem>>, vector<8x128xf32>
    %cst = arith.constant dense<0.000000e+00> : vector<16x128xf32>
    %2 = tpu.matmul %0, %1, %cst {dimension_numbers = #tpu.dot_dimension_numbers<[1], [0], [0], [1], [0, 0, 1, 1], [], []>} : vector<16x8xf32>, vector<8x128xf32>, vector<16x128xf32> -> vector<16x128xf32>
    %c0_3 = arith.constant 0 : index
    %c0_4 = arith.constant 0 : index
    %3 = vector.load %arg4[%c0_3, %c0_4] : memref<1x128xf32, #tpu.memory_space<vmem>>, vector<1x128xf32>
    %4 = vector.broadcast %3 : vector<1x128xf32> to vector<16x128xf32>
    %5 = arith.addf %2, %4 : vector<16x128xf32>
    %c0_5 = arith.constant 0 : index
    %c0_6 = arith.constant 0 : index
    %6 = vector.load %arg3[%c0_5, %c0_6] : memref<32x128xf32, #tpu.memory_space<vmem>>, vector<32x128xf32>
    %cst_7 = arith.constant 0.000000e+00 : f32
    %7 = vector.broadcast %cst_7 : f32 to vector<2x32xf32>
    %cst_8 = arith.constant 0.000000e+00 : f32
    %8 = vector.broadcast %cst_8 : f32 to vector<2x32xf32>
    %9 = vector.extract_strided_slice %5 {offsets = [0, 0], sizes = [2, 128], strides = [1, 1]} : vector<16x128xf32> to vector<2x128xf32>
    %cst_9 = arith.constant dense<0.000000e+00> : vector<2x128xf32>
    %10 = tpu.matmul %7, %6, %cst_9 {dimension_numbers = #tpu.dot_dimension_numbers<[1], [0], [0], [1], [0, 0, 1, 1], [], []>} : vector<2x32xf32>, vector<32x128xf32>, vector<2x128xf32> -> vector<2x128xf32>
    %11 = arith.addf %9, %10 : vector<2x128xf32>
    %12 = arith.negf %11 : vector<2x128xf32>
    %13 = math.exp %12 : vector<2x128xf32>
    %cst_10 = arith.constant 1.000000e+00 : f32
    %14 = vector.broadcast %cst_10 : f32 to vector<2x128xf32>
    %15 = arith.addf %14, %13 : vector<2x128xf32>
    %16 = arith.divf %14, %15 : vector<2x128xf32>
    %17 = math.tanh %11 : vector<2x128xf32>
    %18 = vector.extract_strided_slice %16 {offsets = [0, 0], sizes = [2, 32], strides = [1, 1]} : vector<2x128xf32> to vector<2x32xf32>
    %19 = vector.extract_strided_slice %16 {offsets = [0, 32], sizes = [2, 32], strides = [1, 1]} : vector<2x128xf32> to vector<2x32xf32>
    %20 = vector.extract_strided_slice %17 {offsets = [0, 64], sizes = [2, 32], strides = [1, 1]} : vector<2x128xf32> to vector<2x32xf32>
    %21 = vector.extract_strided_slice %16 {offsets = [0, 96], sizes = [2, 32], strides = [1, 1]} : vector<2x128xf32> to vector<2x32xf32>
    %22 = arith.mulf %19, %8 : vector<2x32xf32>
    %23 = arith.mulf %18, %20 : vector<2x32xf32>
    %24 = arith.addf %22, %23 : vector<2x32xf32>
    %25 = math.tanh %24 : vector<2x32xf32>
    %26 = arith.mulf %21, %25 : vector<2x32xf32>
    %27 = vector.extract_strided_slice %5 {offsets = [2, 0], sizes = [2, 128], strides = [1, 1]} : vector<16x128xf32> to vector<2x128xf32>
    %cst_11 = arith.constant dense<0.000000e+00> : vector<2x128xf32>
    %28 = tpu.matmul %26, %6, %cst_11 {dimension_numbers = #tpu.dot_dimension_numbers<[1], [0], [0], [1], [0, 0, 1, 1], [], []>} : vector<2x32xf32>, vector<32x128xf32>, vector<2x128xf32> -> vector<2x128xf32>
    %29 = arith.addf %27, %28 : vector<2x128xf32>
    %30 = arith.negf %29 : vector<2x128xf32>
    %31 = math.exp %30 : vector<2x128xf32>
    %cst_12 = arith.constant 1.000000e+00 : f32
    %32 = vector.broadcast %cst_12 : f32 to vector<2x128xf32>
    %33 = arith.addf %32, %31 : vector<2x128xf32>
    %34 = arith.divf %32, %33 : vector<2x128xf32>
    %35 = math.tanh %29 : vector<2x128xf32>
    %36 = vector.extract_strided_slice %34 {offsets = [0, 0], sizes = [2, 32], strides = [1, 1]} : vector<2x128xf32> to vector<2x32xf32>
    %37 = vector.extract_strided_slice %34 {offsets = [0, 32], sizes = [2, 32], strides = [1, 1]} : vector<2x128xf32> to vector<2x32xf32>
    %38 = vector.extract_strided_slice %35 {offsets = [0, 64], sizes = [2, 32], strides = [1, 1]} : vector<2x128xf32> to vector<2x32xf32>
    %39 = vector.extract_strided_slice %34 {offsets = [0, 96], sizes = [2, 32], strides = [1, 1]} : vector<2x128xf32> to vector<2x32xf32>
    %40 = arith.mulf %37, %24 : vector<2x32xf32>
    %41 = arith.mulf %36, %38 : vector<2x32xf32>
    %42 = arith.addf %40, %41 : vector<2x32xf32>
    %43 = math.tanh %42 : vector<2x32xf32>
    %44 = arith.mulf %39, %43 : vector<2x32xf32>
    %45 = vector.extract_strided_slice %5 {offsets = [4, 0], sizes = [2, 128], strides = [1, 1]} : vector<16x128xf32> to vector<2x128xf32>
    %cst_13 = arith.constant dense<0.000000e+00> : vector<2x128xf32>
    %46 = tpu.matmul %44, %6, %cst_13 {dimension_numbers = #tpu.dot_dimension_numbers<[1], [0], [0], [1], [0, 0, 1, 1], [], []>} : vector<2x32xf32>, vector<32x128xf32>, vector<2x128xf32> -> vector<2x128xf32>
    %47 = arith.addf %45, %46 : vector<2x128xf32>
    %48 = arith.negf %47 : vector<2x128xf32>
    %49 = math.exp %48 : vector<2x128xf32>
    %cst_14 = arith.constant 1.000000e+00 : f32
    %50 = vector.broadcast %cst_14 : f32 to vector<2x128xf32>
    %51 = arith.addf %50, %49 : vector<2x128xf32>
    %52 = arith.divf %50, %51 : vector<2x128xf32>
    %53 = math.tanh %47 : vector<2x128xf32>
    %54 = vector.extract_strided_slice %52 {offsets = [0, 0], sizes = [2, 32], strides = [1, 1]} : vector<2x128xf32> to vector<2x32xf32>
    %55 = vector.extract_strided_slice %52 {offsets = [0, 32], sizes = [2, 32], strides = [1, 1]} : vector<2x128xf32> to vector<2x32xf32>
    %56 = vector.extract_strided_slice %53 {offsets = [0, 64], sizes = [2, 32], strides = [1, 1]} : vector<2x128xf32> to vector<2x32xf32>
    %57 = vector.extract_strided_slice %52 {offsets = [0, 96], sizes = [2, 32], strides = [1, 1]} : vector<2x128xf32> to vector<2x32xf32>
    %58 = arith.mulf %55, %42 : vector<2x32xf32>
    %59 = arith.mulf %54, %56 : vector<2x32xf32>
    %60 = arith.addf %58, %59 : vector<2x32xf32>
    %61 = math.tanh %60 : vector<2x32xf32>
    %62 = arith.mulf %57, %61 : vector<2x32xf32>
    %63 = vector.extract_strided_slice %5 {offsets = [6, 0], sizes = [2, 128], strides = [1, 1]} : vector<16x128xf32> to vector<2x128xf32>
    %cst_15 = arith.constant dense<0.000000e+00> : vector<2x128xf32>
    %64 = tpu.matmul %62, %6, %cst_15 {dimension_numbers = #tpu.dot_dimension_numbers<[1], [0], [0], [1], [0, 0, 1, 1], [], []>} : vector<2x32xf32>, vector<32x128xf32>, vector<2x128xf32> -> vector<2x128xf32>
    %65 = arith.addf %63, %64 : vector<2x128xf32>
    %66 = arith.negf %65 : vector<2x128xf32>
    %67 = math.exp %66 : vector<2x128xf32>
    %cst_16 = arith.constant 1.000000e+00 : f32
    %68 = vector.broadcast %cst_16 : f32 to vector<2x128xf32>
    %69 = arith.addf %68, %67 : vector<2x128xf32>
    %70 = arith.divf %68, %69 : vector<2x128xf32>
    %71 = math.tanh %65 : vector<2x128xf32>
    %72 = vector.extract_strided_slice %70 {offsets = [0, 0], sizes = [2, 32], strides = [1, 1]} : vector<2x128xf32> to vector<2x32xf32>
    %73 = vector.extract_strided_slice %70 {offsets = [0, 32], sizes = [2, 32], strides = [1, 1]} : vector<2x128xf32> to vector<2x32xf32>
    %74 = vector.extract_strided_slice %71 {offsets = [0, 64], sizes = [2, 32], strides = [1, 1]} : vector<2x128xf32> to vector<2x32xf32>
    %75 = vector.extract_strided_slice %70 {offsets = [0, 96], sizes = [2, 32], strides = [1, 1]} : vector<2x128xf32> to vector<2x32xf32>
    %76 = arith.mulf %73, %60 : vector<2x32xf32>
    %77 = arith.mulf %72, %74 : vector<2x32xf32>
    %78 = arith.addf %76, %77 : vector<2x32xf32>
    %79 = math.tanh %78 : vector<2x32xf32>
    %80 = arith.mulf %75, %79 : vector<2x32xf32>
    %81 = vector.extract_strided_slice %5 {offsets = [8, 0], sizes = [2, 128], strides = [1, 1]} : vector<16x128xf32> to vector<2x128xf32>
    %cst_17 = arith.constant dense<0.000000e+00> : vector<2x128xf32>
    %82 = tpu.matmul %80, %6, %cst_17 {dimension_numbers = #tpu.dot_dimension_numbers<[1], [0], [0], [1], [0, 0, 1, 1], [], []>} : vector<2x32xf32>, vector<32x128xf32>, vector<2x128xf32> -> vector<2x128xf32>
    %83 = arith.addf %81, %82 : vector<2x128xf32>
    %84 = arith.negf %83 : vector<2x128xf32>
    %85 = math.exp %84 : vector<2x128xf32>
    %cst_18 = arith.constant 1.000000e+00 : f32
    %86 = vector.broadcast %cst_18 : f32 to vector<2x128xf32>
    %87 = arith.addf %86, %85 : vector<2x128xf32>
    %88 = arith.divf %86, %87 : vector<2x128xf32>
    %89 = math.tanh %83 : vector<2x128xf32>
    %90 = vector.extract_strided_slice %88 {offsets = [0, 0], sizes = [2, 32], strides = [1, 1]} : vector<2x128xf32> to vector<2x32xf32>
    %91 = vector.extract_strided_slice %88 {offsets = [0, 32], sizes = [2, 32], strides = [1, 1]} : vector<2x128xf32> to vector<2x32xf32>
    %92 = vector.extract_strided_slice %89 {offsets = [0, 64], sizes = [2, 32], strides = [1, 1]} : vector<2x128xf32> to vector<2x32xf32>
    %93 = vector.extract_strided_slice %88 {offsets = [0, 96], sizes = [2, 32], strides = [1, 1]} : vector<2x128xf32> to vector<2x32xf32>
    %94 = arith.mulf %91, %78 : vector<2x32xf32>
    %95 = arith.mulf %90, %92 : vector<2x32xf32>
    %96 = arith.addf %94, %95 : vector<2x32xf32>
    %97 = math.tanh %96 : vector<2x32xf32>
    %98 = arith.mulf %93, %97 : vector<2x32xf32>
    %99 = vector.extract_strided_slice %5 {offsets = [10, 0], sizes = [2, 128], strides = [1, 1]} : vector<16x128xf32> to vector<2x128xf32>
    %cst_19 = arith.constant dense<0.000000e+00> : vector<2x128xf32>
    %100 = tpu.matmul %98, %6, %cst_19 {dimension_numbers = #tpu.dot_dimension_numbers<[1], [0], [0], [1], [0, 0, 1, 1], [], []>} : vector<2x32xf32>, vector<32x128xf32>, vector<2x128xf32> -> vector<2x128xf32>
    %101 = arith.addf %99, %100 : vector<2x128xf32>
    %102 = arith.negf %101 : vector<2x128xf32>
    %103 = math.exp %102 : vector<2x128xf32>
    %cst_20 = arith.constant 1.000000e+00 : f32
    %104 = vector.broadcast %cst_20 : f32 to vector<2x128xf32>
    %105 = arith.addf %104, %103 : vector<2x128xf32>
    %106 = arith.divf %104, %105 : vector<2x128xf32>
    %107 = math.tanh %101 : vector<2x128xf32>
    %108 = vector.extract_strided_slice %106 {offsets = [0, 0], sizes = [2, 32], strides = [1, 1]} : vector<2x128xf32> to vector<2x32xf32>
    %109 = vector.extract_strided_slice %106 {offsets = [0, 32], sizes = [2, 32], strides = [1, 1]} : vector<2x128xf32> to vector<2x32xf32>
    %110 = vector.extract_strided_slice %107 {offsets = [0, 64], sizes = [2, 32], strides = [1, 1]} : vector<2x128xf32> to vector<2x32xf32>
    %111 = vector.extract_strided_slice %106 {offsets = [0, 96], sizes = [2, 32], strides = [1, 1]} : vector<2x128xf32> to vector<2x32xf32>
    %112 = arith.mulf %109, %96 : vector<2x32xf32>
    %113 = arith.mulf %108, %110 : vector<2x32xf32>
    %114 = arith.addf %112, %113 : vector<2x32xf32>
    %115 = math.tanh %114 : vector<2x32xf32>
    %116 = arith.mulf %111, %115 : vector<2x32xf32>
    %117 = vector.extract_strided_slice %5 {offsets = [12, 0], sizes = [2, 128], strides = [1, 1]} : vector<16x128xf32> to vector<2x128xf32>
    %cst_21 = arith.constant dense<0.000000e+00> : vector<2x128xf32>
    %118 = tpu.matmul %116, %6, %cst_21 {dimension_numbers = #tpu.dot_dimension_numbers<[1], [0], [0], [1], [0, 0, 1, 1], [], []>} : vector<2x32xf32>, vector<32x128xf32>, vector<2x128xf32> -> vector<2x128xf32>
    %119 = arith.addf %117, %118 : vector<2x128xf32>
    %120 = arith.negf %119 : vector<2x128xf32>
    %121 = math.exp %120 : vector<2x128xf32>
    %cst_22 = arith.constant 1.000000e+00 : f32
    %122 = vector.broadcast %cst_22 : f32 to vector<2x128xf32>
    %123 = arith.addf %122, %121 : vector<2x128xf32>
    %124 = arith.divf %122, %123 : vector<2x128xf32>
    %125 = math.tanh %119 : vector<2x128xf32>
    %126 = vector.extract_strided_slice %124 {offsets = [0, 0], sizes = [2, 32], strides = [1, 1]} : vector<2x128xf32> to vector<2x32xf32>
    %127 = vector.extract_strided_slice %124 {offsets = [0, 32], sizes = [2, 32], strides = [1, 1]} : vector<2x128xf32> to vector<2x32xf32>
    %128 = vector.extract_strided_slice %125 {offsets = [0, 64], sizes = [2, 32], strides = [1, 1]} : vector<2x128xf32> to vector<2x32xf32>
    %129 = vector.extract_strided_slice %124 {offsets = [0, 96], sizes = [2, 32], strides = [1, 1]} : vector<2x128xf32> to vector<2x32xf32>
    %130 = arith.mulf %127, %114 : vector<2x32xf32>
    %131 = arith.mulf %126, %128 : vector<2x32xf32>
    %132 = arith.addf %130, %131 : vector<2x32xf32>
    %133 = math.tanh %132 : vector<2x32xf32>
    %134 = arith.mulf %129, %133 : vector<2x32xf32>
    %135 = vector.extract_strided_slice %5 {offsets = [14, 0], sizes = [2, 128], strides = [1, 1]} : vector<16x128xf32> to vector<2x128xf32>
    %cst_23 = arith.constant dense<0.000000e+00> : vector<2x128xf32>
    %136 = tpu.matmul %134, %6, %cst_23 {dimension_numbers = #tpu.dot_dimension_numbers<[1], [0], [0], [1], [0, 0, 1, 1], [], []>} : vector<2x32xf32>, vector<32x128xf32>, vector<2x128xf32> -> vector<2x128xf32>
    %137 = arith.addf %135, %136 : vector<2x128xf32>
    %138 = arith.negf %137 : vector<2x128xf32>
    %139 = math.exp %138 : vector<2x128xf32>
    %cst_24 = arith.constant 1.000000e+00 : f32
    %140 = vector.broadcast %cst_24 : f32 to vector<2x128xf32>
    %141 = arith.addf %140, %139 : vector<2x128xf32>
    %142 = arith.divf %140, %141 : vector<2x128xf32>
    %143 = math.tanh %137 : vector<2x128xf32>
    %144 = vector.extract_strided_slice %142 {offsets = [0, 0], sizes = [2, 32], strides = [1, 1]} : vector<2x128xf32> to vector<2x32xf32>
    %145 = vector.extract_strided_slice %142 {offsets = [0, 32], sizes = [2, 32], strides = [1, 1]} : vector<2x128xf32> to vector<2x32xf32>
    %146 = vector.extract_strided_slice %143 {offsets = [0, 64], sizes = [2, 32], strides = [1, 1]} : vector<2x128xf32> to vector<2x32xf32>
    %147 = vector.extract_strided_slice %142 {offsets = [0, 96], sizes = [2, 32], strides = [1, 1]} : vector<2x128xf32> to vector<2x32xf32>
    %148 = arith.mulf %145, %132 : vector<2x32xf32>
    %149 = arith.mulf %144, %146 : vector<2x32xf32>
    %150 = arith.addf %148, %149 : vector<2x32xf32>
    %151 = math.tanh %150 : vector<2x32xf32>
    %152 = arith.mulf %147, %151 : vector<2x32xf32>
    %c0_25 = arith.constant 0 : index
    %c0_26 = arith.constant 0 : index
    %153 = vector.load %arg5[%c0_25, %c0_26] : memref<32x16xf32, #tpu.memory_space<vmem>>, vector<32x16xf32>
    %cst_27 = arith.constant dense<0.000000e+00> : vector<2x16xf32>
    %154 = tpu.matmul %152, %153, %cst_27 {dimension_numbers = #tpu.dot_dimension_numbers<[1], [0], [0], [1], [0, 0, 1, 1], [], []>} : vector<2x32xf32>, vector<32x16xf32>, vector<2x16xf32> -> vector<2x16xf32>
    %c0_28 = arith.constant 0 : index
    %c0_29 = arith.constant 0 : index
    %155 = vector.load %arg6[%c0_28, %c0_29] : memref<1x16xf32, #tpu.memory_space<vmem>>, vector<1x16xf32>
    %156 = vector.broadcast %155 : vector<1x16xf32> to vector<2x16xf32>
    %157 = arith.addf %154, %156 : vector<2x16xf32>
    %158 = tpu.iota {dimensions = array<i32: 1>} : vector<2x16xi32>
    %c8_i32 = arith.constant 8 : i32
    %159 = vector.broadcast %c8_i32 : i32 to vector<2x16xi32>
    %160 = arith.cmpi slt, %158, %159 : vector<2x16xi32>
    %161 = math.exp %157 : vector<2x16xf32>
    %162 = arith.select %160, %157, %161 : vector<2x16xi1>, vector<2x16xf32>
    %c0_30 = arith.constant 0 : index
    %c0_31 = arith.constant 0 : index
    %163 = vector.load %arg7[%c0_30, %c0_31] : memref<2x16xf32, #tpu.memory_space<vmem>>, vector<2x16xf32>
    tpu.vector_store %arg7[%c0_30, %c0_31], %162 {strides = array<i32>} : memref<2x16xf32, #tpu.memory_space<vmem>>, vector<2x16xf32>,
    return
  }
  func.func @transform_0(%arg0: i32) -> (i32, i32) {
    %c0_i32 = arith.constant 0 : i32
    %c0_i32_0 = arith.constant 0 : i32
    %c0_i32_1 = arith.constant 0 : i32
    return %c0_i32, %c0_i32_0 : i32, i32
  }
  func.func @transform_1(%arg0: i32) -> (i32, i32) {
    %c0_i32 = arith.constant 0 : i32
    %c0_i32_0 = arith.constant 0 : i32
    %c0_i32_1 = arith.constant 0 : i32
    return %c0_i32, %c0_i32_0 : i32, i32
  }
  func.func @transform_2(%arg0: i32) -> (i32, i32) {
    %c0_i32 = arith.constant 0 : i32
    %c0_i32_0 = arith.constant 0 : i32
    %c0_i32_1 = arith.constant 0 : i32
    return %c0_i32, %c0_i32_0 : i32, i32
  }
  func.func @transform_3(%arg0: i32) -> (i32, i32) {
    %c0_i32 = arith.constant 0 : i32
    %c0_i32_0 = arith.constant 0 : i32
    %c0_i32_1 = arith.constant 0 : i32
    return %c0_i32, %c0_i32_0 : i32, i32
  }
  func.func @transform_4(%arg0: i32) -> (i32, i32) {
    %c0_i32 = arith.constant 0 : i32
    %c0_i32_0 = arith.constant 0 : i32
    %c0_i32_1 = arith.constant 0 : i32
    return %c0_i32, %c0_i32_0 : i32, i32
  }
  func.func @transform_5(%arg0: i32) -> (i32, i32) {
    %c0_i32 = arith.constant 0 : i32
    %c0_i32_0 = arith.constant 0 : i32
    %c0_i32_1 = arith.constant 0 : i32
    return %c0_i32, %c0_i32_0 : i32, i32
  }
  func.func @transform_6(%arg0: i32) -> (i32, i32) {
    %c0_i32 = arith.constant 0 : i32
    %c0_i32_0 = arith.constant 0 : i32
    %c0_i32_1 = arith.constant 0 : i32
    return %c0_i32, %c0_i32_0 : i32, i32
  }
}

</mosaic_0001>

<llo_original>
// kernel: latent_action_lstm_forward.1
$region0: #{latent_action_lstm_forward.1}
  #allocation0 [shape = 'u32[]', space=smem, size = 0x4, offset = 0x4, fixed_abs, tag = 'smem constant byte address 0x4 - core index']
  #allocation1 [shape = 'u32[72,128]{1,0:T(1,128)}', space=vmem, size = 0x9000, scoped, tag = 'internal scratch']
  %s0 = inlined_call_operand.vmem [shape: f32[16,8], index: 0, kind: input, shape index: {}]
  %s1 = inlined_call_operand.vmem [shape: f32[8,128], index: 1, kind: input, shape index: {}]
  %s2 = inlined_call_operand.vmem [shape: f32[32,128], index: 2, kind: input, shape index: {}]
  %s3 = inlined_call_operand.vmem [shape: f32[1,128], index: 3, kind: input, shape index: {}]
  %s4 = inlined_call_operand.vmem [shape: f32[32,16], index: 4, kind: input, shape index: {}]
  %s5 = inlined_call_operand.vmem [shape: f32[1,16], index: 5, kind: input, shape index: {}]
  %s6 = inlined_call_operand.vmem [shape: f32[2,16], index: 6, kind: output, shape index: {}]
  %s7 = sld [smem:[#allocation0]]
  $region34: #{latent_action_lstm_forward.1} parent=0
    _
  %s9 = ssub.s32 1, %s7
  %s10 = scalar_select 0, %s9, %s7
  // Predicated region
  $region2: #{latent_action_lstm_forward.1} parent=0 // pred_check
    _
  $region3: #{latent_action_lstm_forward.1} parent=0 // pred_check_branch
    %12 = sbr.rel (0) target = $region5
  $region4: #{latent_action_lstm_forward.1} parent=0 // pred_region
    _
  $region5: #{latent_action_lstm_forward.1} parent=0 // pred_fallthru
    _
  // Predicated region
  $region6: #{latent_action_lstm_forward.1} parent=0 // pred_check
    _
  $region7: #{latent_action_lstm_forward.1} parent=0 // pred_check_branch
    %14 = sbr.rel (0) target = $region9
  $region8: #{latent_action_lstm_forward.1} parent=0 // pred_region
    _
  $region9: #{latent_action_lstm_forward.1} parent=0 // pred_fallthru
    _
  // Predicated region
  $region10: #{latent_action_lstm_forward.1} parent=0 // pred_check
    _
  $region11: #{latent_action_lstm_forward.1} parent=0 // pred_check_branch
    %16 = sbr.rel (0) target = $region13
  $region12: #{latent_action_lstm_forward.1} parent=0 // pred_region
    _
  $region13: #{latent_action_lstm_forward.1} parent=0 // pred_fallthru
    _
  // Predicated region
  $region14: #{latent_action_lstm_forward.1} parent=0 // pred_check
    _
  $region15: #{latent_action_lstm_forward.1} parent=0 // pred_check_branch
    %18 = sbr.rel (0) target = $region17
  $region16: #{latent_action_lstm_forward.1} parent=0 // pred_region
    _
  $region17: #{latent_action_lstm_forward.1} parent=0 // pred_fallthru
    _
  // Predicated region
  $region18: #{latent_action_lstm_forward.1} parent=0 // pred_check
    _
  $region19: #{latent_action_lstm_forward.1} parent=0 // pred_check_branch
    %20 = sbr.rel (0) target = $region21
  $region20: #{latent_action_lstm_forward.1} parent=0 // pred_region
    _
  $region21: #{latent_action_lstm_forward.1} parent=0 // pred_fallthru
    _
  // Predicated region
  $region22: #{latent_action_lstm_forward.1} parent=0 // pred_check
    _
  $region23: #{latent_action_lstm_forward.1} parent=0 // pred_check_branch
    %22 = sbr.rel (0) target = $region25
  $region24: #{latent_action_lstm_forward.1} parent=0 // pred_region
    _
  $region25: #{latent_action_lstm_forward.1} parent=0 // pred_fallthru
    _
  %v23 = vld [vmem:[%s0] sm:$0xff]
  %v24 = vld [vmem:[%s0 + $0x8] sm:$0xff]
  %v25 = vld [vmem:[%s1] sm:$0xff]
  %v26 = vld [vmem:[%s3] sm:$0x1]
  %v28 = vperm.slane %v26, 0
  %vm30 = vcmask 64512
  %v32 = vsel %vm30, %v23, 0
  %v35 = vsel %vm30, %v24, 0
  %37 = vmatpush.msra.mxu0 0.0
  %38 = vmatpush.msra.mxu0 0.0
  %39 = vmatpush.msra.mxu0 0.0
  %40 = vmatpush.msra.mxu0 0.0
  %41 = vmatpush.msra.mxu0 0.0
  %42 = vmatpush.msra.mxu0 0.0
  %43 = vmatpush.msra.mxu0 0.0
  %44 = vmatpush.msra.mxu0 0.0
  %45 = vmatpush.msra.mxu0 0.0
  %46 = vmatpush.msra.mxu0 0.0
  %47 = vmatpush.msra.mxu0 0.0
  %48 = vmatpush.msra.mxu0 0.0
  %49 = vmatpush.msra.mxu0 0.0
  %50 = vmatpush.msra.mxu0 0.0
  %51 = vmatpush.msra.mxu0 0.0
  %52 = vmatpush.msra.mxu0 %v25
  %53 = vmatmul.f32.gmra.mxu0 %v32
  %v54 = vpop.f32.mrf.mxu0
  %v55 = vadd.f32 %v28, %v54
  %56 = vmatmul.f32.gmra.mxu0 %v35
  %v57 = vpop.f32.mrf.mxu0
  %v58 = vadd.f32 %v28, %v57
  %59 = vdwg.mxu0
  %v60 = vld [vmem:[%s2] sm:$0xff]
  %v61 = vld [vmem:[%s2 + $0x8] sm:$0xff]
  %v62 = vld [vmem:[%s2 + $0x10] sm:$0xff]
  %v63 = vld [vmem:[%s2 + $0x18] sm:$0xff]
  %vm64 = vcmask 261120
  %v66 = vsel %vm64, 0.0, 0
  %68 = vmatpush.msra.mxu0 0.0
  %69 = vmatpush.msra.mxu0 0.0
  %70 = vmatpush.msra.mxu0 0.0
  %71 = vmatpush.msra.mxu0 0.0
  %72 = vmatpush.msra.mxu0 0.0
  %73 = vmatpush.msra.mxu0 0.0
  %74 = vmatpush.msra.mxu0 0.0
  %75 = vmatpush.msra.mxu0 0.0
  %76 = vmatpush.msra.mxu0 0.0
  %77 = vmatpush.msra.mxu0 0.0
  %78 = vmatpush.msra.mxu0 0.0
  %79 = vmatpush.msra.mxu0 0.0
  %80 = vmatpush.msra.mxu0 %v63
  %81 = vmatpush.msra.mxu0 %v62
  %82 = vmatpush.msra.mxu0 %v61
  %83 = vmatpush.msra.mxu0 %v60
  %84 = vmatmul.f32.gmra.mxu0 %v66
  %v85 = vpop.f32.mrf.mxu0
  %v86 = vadd.f32 0.0, %v85
  %87 = vdwg.mxu0
  %v88 = vadd.f32 %v55, %v86
  %v89 = vxor.u32 %v88, 2147483648
  %v90 = vmul.f32 %v89, 1.442695
  %v91 = vpow.pop %v90
  %v92 = vadd.f32 %v91, 1.0
  %v93 = vrcp.pop %v92
  %v94 = vmul.f32 %v92, %v93
  %v95 = vsub.f32 1.0, %v94
  %v96 = vmul.f32 %v93, %v95
  %v97 = vadd.f32 %v93, %v96
  %vm98 = vweird.f32 %v92
  %vm99 = vweird.f32 %v93
  %vm100 = vmor %vm98, %vm99
  %v101 = vsel %vm100, %v93, %v97
  %v102 = vand.u32 2147483647, %v92
  %vm103 = vcmp.eq.f32.partialorder %v102, 8.507059e+37
  %v104 = vand.u32 %v92, 2147483648
  %v105 = vor.u32 1.1754944e-38, %v104
  %v106 = vsel %vm103, %v105, %v101
  %v107 = vmul.f32 1.0, %v106
  %v108 = vtanh.pop %v88
  %v109 = vmul.f32 %v107, 0.0
  %111 = vrot.lane.b32.xlu0 %v108, 64
  %v112 = vpop.permute.xlu0 %111
  %v114 = vmul.f32 %v107, %v112
  %116 = vrot.lane.b32.xlu0 %v114, 32
  %v117 = vpop.permute.xlu0 %116
  %v119 = vadd.f32 %v109, %v117
  %v120 = vtanh.pop %v119
  %122 = vrot.lane.b32.xlu0 %v120, 64
  %v123 = vpop.permute.xlu0 %122
  %v125 = vmul.f32 %v107, %v123
  %127 = vrot.lane.b32.xlu0 %v125, 32
  %v128 = vpop.permute.xlu0 %127
  %v129 = vsel %vm64, %v128, 0
  %131 = vmatpush.msra.mxu0 0.0
  %132 = vmatpush.msra.mxu0 0.0
  %133 = vmatpush.msra.mxu0 0.0
  %134 = vmatpush.msra.mxu0 0.0
  %135 = vmatpush.msra.mxu0 0.0
  %136 = vmatpush.msra.mxu0 0.0
  %137 = vmatpush.msra.mxu0 0.0
  %138 = vmatpush.msra.mxu0 0.0
  %139 = vmatpush.msra.mxu0 0.0
  %140 = vmatpush.msra.mxu0 0.0
  %141 = vmatpush.msra.mxu0 0.0
  %142 = vmatpush.msra.mxu0 0.0
  %143 = vmatpush.msra.mxu0 %v63
  %144 = vmatpush.msra.mxu0 %v62
  %145 = vmatpush.msra.mxu0 %v61
  %146 = vmatpush.msra.mxu0 %v60
  %147 = vmatmul.f32.gmra.mxu0 %v129
  %v148 = vpop.f32.mrf.mxu0
  %v149 = vadd.f32 0.0, %v148
  %150 = vdwg.mxu0
  %v152 = vrot.slane %v149, 6
  %v154 = vadd.f32 %v55, %v152
  %v155 = vxor.u32 %v154, 2147483648
  %v156 = vmul.f32 %v155, 1.442695
  %v157 = vpow.pop %v156
  %v158 = vadd.f32 %v157, 1.0
  %v159 = vrcp.pop %v158
  %v160 = vmul.f32 %v158, %v159
  %v161 = vsub.f32 1.0, %v160
  %v162 = vmul.f32 %v159, %v161
  %v163 = vadd.f32 %v159, %v162
  %vm164 = vweird.f32 %v158
  %vm165 = vweird.f32 %v159
  %vm166 = vmor %vm164, %vm165
  %v167 = vsel %vm166, %v159, %v163
  %v168 = vand.u32 2147483647, %v158
  %vm169 = vcmp.eq.f32.partialorder %v168, 8.507059e+37
  %v170 = vand.u32 %v158, 2147483648
  %v171 = vor.u32 1.1754944e-38, %v170
  %v172 = vsel %vm169, %v171, %v167
  %v173 = vmul.f32 1.0, %v172
  %v174 = vtanh.pop %v154
  %v176 = vrot.slane %v119, 6
  %v178 = vmul.f32 %v173, %v176
  %180 = vrot.lane.b32.xlu0 %v174, 64
  %v181 = vpop.permute.xlu0 %180
  %v183 = vmul.f32 %v173, %v181
  %185 = vrot.lane.b32.xlu0 %v183, 32
  %v186 = vpop.permute.xlu0 %185
  %v188 = vadd.f32 %v178, %v186
  %v189 = vtanh.pop %v188
  %191 = vrot.lane.b32.xlu0 %v189, 64
  %v192 = vpop.permute.xlu0 %191
  %v194 = vmul.f32 %v173, %v192
  %v196 = vrot.slane %v194, 2
  %197 = vrot.lane.b32.xlu0 %v196, 32
  %v198 = vpop.permute.xlu0 %197
  %v199 = vsel %vm64, %v198, 0
  %201 = vmatpush.msra.mxu0 0.0
  %202 = vmatpush.msra.mxu0 0.0
  %203 = vmatpush.msra.mxu0 0.0
  %204 = vmatpush.msra.mxu0 0.0
  %205 = vmatpush.msra.mxu0 0.0
  %206 = vmatpush.msra.mxu0 0.0
  %207 = vmatpush.msra.mxu0 0.0
  %208 = vmatpush.msra.mxu0 0.0
  %209 = vmatpush.msra.mxu0 0.0
  %210 = vmatpush.msra.mxu0 0.0
  %211 = vmatpush.msra.mxu0 0.0
  %212 = vmatpush.msra.mxu0 0.0
  %213 = vmatpush.msra.mxu0 %v63
  %214 = vmatpush.msra.mxu0 %v62
  %215 = vmatpush.msra.mxu0 %v61
  %216 = vmatpush.msra.mxu0 %v60
  %217 = vmatmul.f32.gmra.mxu0 %v199
  %v218 = vpop.f32.mrf.mxu0
  %v219 = vadd.f32 0.0, %v218
  %220 = vdwg.mxu0
  %v222 = vrot.slane %v219, 4
  %v224 = vadd.f32 %v55, %v222
  %v225 = vxor.u32 %v224, 2147483648
  %v226 = vmul.f32 %v225, 1.442695
  %v227 = vpow.pop %v226
  %v228 = vadd.f32 %v227, 1.0
  %v229 = vrcp.pop %v228
  %v230 = vmul.f32 %v228, %v229
  %v231 = vsub.f32 1.0, %v230
  %v232 = vmul.f32 %v229, %v231
  %v233 = vadd.f32 %v229, %v232
  %vm234 = vweird.f32 %v228
  %vm235 = vweird.f32 %v229
  %vm236 = vmor %vm234, %vm235
  %v237 = vsel %vm236, %v229, %v233
  %v238 = vand.u32 2147483647, %v228
  %vm239 = vcmp.eq.f32.partialorder %v238, 8.507059e+37
  %v240 = vand.u32 %v228, 2147483648
  %v241 = vor.u32 1.1754944e-38, %v240
  %v242 = vsel %vm239, %v241, %v237
  %v243 = vmul.f32 1.0, %v242
  %v244 = vtanh.pop %v224
  %v246 = vrot.slane %v188, 6
  %v248 = vmul.f32 %v243, %v246
  %250 = vrot.lane.b32.xlu0 %v244, 64
  %v251 = vpop.permute.xlu0 %250
  %v253 = vmul.f32 %v243, %v251
  %255 = vrot.lane.b32.xlu0 %v253, 32
  %v256 = vpop.permute.xlu0 %255
  %v258 = vadd.f32 %v248, %v256
  %v259 = vtanh.pop %v258
  %261 = vrot.lane.b32.xlu0 %v259, 64
  %v262 = vpop.permute.xlu0 %261
  %v264 = vmul.f32 %v243, %v262
  %v266 = vrot.slane %v264, 4
  %267 = vrot.lane.b32.xlu0 %v266, 32
  %v268 = vpop.permute.xlu0 %267
  %v269 = vsel %vm64, %v268, 0
  %271 = vmatpush.msra.mxu0 0.0
  %272 = vmatpush.msra.mxu0 0.0
  %273 = vmatpush.msra.mxu0 0.0
  %274 = vmatpush.msra.mxu0 0.0
  %275 = vmatpush.msra.mxu0 0.0
  %276 = vmatpush.msra.mxu0 0.0
  %277 = vmatpush.msra.mxu0 0.0
  %278 = vmatpush.msra.mxu0 0.0
  %279 = vmatpush.msra.mxu0 0.0
  %280 = vmatpush.msra.mxu0 0.0
  %281 = vmatpush.msra.mxu0 0.0
  %282 = vmatpush.msra.mxu0 0.0
  %283 = vmatpush.msra.mxu0 %v63
  %284 = vmatpush.msra.mxu0 %v62
  %285 = vmatpush.msra.mxu0 %v61
  %286 = vmatpush.msra.mxu0 %v60
  %287 = vmatmul.f32.gmra.mxu0 %v269
  %v288 = vpop.f32.mrf.mxu0
  %v289 = vadd.f32 0.0, %v288
  %290 = vdwg.mxu0
  %v292 = vrot.slane %v289, 2
  %v294 = vadd.f32 %v55, %v292
  %v295 = vxor.u32 %v294, 2147483648
  %v296 = vmul.f32 %v295, 1.442695
  %v297 = vpow.pop %v296
  %v298 = vadd.f32 %v297, 1.0
  %v299 = vrcp.pop %v298
  %v300 = vmul.f32 %v298, %v299
  %v301 = vsub.f32 1.0, %v300
  %v302 = vmul.f32 %v299, %v301
  %v303 = vadd.f32 %v299, %v302
  %vm304 = vweird.f32 %v298
  %vm305 = vweird.f32 %v299
  %vm306 = vmor %vm304, %vm305
  %v307 = vsel %vm306, %v299, %v303
  %v308 = vand.u32 2147483647, %v298
  %vm309 = vcmp.eq.f32.partialorder %v308, 8.507059e+37
  %v310 = vand.u32 %v298, 2147483648
  %v311 = vor.u32 1.1754944e-38, %v310
  %v312 = vsel %vm309, %v311, %v307
  %v313 = vmul.f32 1.0, %v312
  %v314 = vtanh.pop %v294
  %v316 = vrot.slane %v258, 6
  %v318 = vmul.f32 %v313, %v316
  %320 = vrot.lane.b32.xlu0 %v314, 64
  %v321 = vpop.permute.xlu0 %320
  %v323 = vmul.f32 %v313, %v321
  %325 = vrot.lane.b32.xlu0 %v323, 32
  %v326 = vpop.permute.xlu0 %325
  %v328 = vadd.f32 %v318, %v326
  %v329 = vtanh.pop %v328
  %331 = vrot.lane.b32.xlu0 %v329, 64
  %v332 = vpop.permute.xlu0 %331
  %v334 = vmul.f32 %v313, %v332
  %v336 = vrot.slane %v334, 6
  %337 = vrot.lane.b32.xlu0 %v336, 32
  %v338 = vpop.permute.xlu0 %337
  %v339 = vsel %vm64, %v338, 0
  %341 = vmatpush.msra.mxu0 0.0
  %342 = vmatpush.msra.mxu0 0.0
  %343 = vmatpush.msra.mxu0 0.0
  %344 = vmatpush.msra.mxu0 0.0
  %345 = vmatpush.msra.mxu0 0.0
  %346 = vmatpush.msra.mxu0 0.0
  %347 = vmatpush.msra.mxu0 0.0
  %348 = vmatpush.msra.mxu0 0.0
  %349 = vmatpush.msra.mxu0 0.0
  %350 = vmatpush.msra.mxu0 0.0
  %351 = vmatpush.msra.mxu0 0.0
  %352 = vmatpush.msra.mxu0 0.0
  %353 = vmatpush.msra.mxu0 %v63
  %354 = vmatpush.msra.mxu0 %v62
  %355 = vmatpush.msra.mxu0 %v61
  %356 = vmatpush.msra.mxu0 %v60
  %357 = vmatmul.f32.gmra.mxu0 %v339
  %v358 = vpop.f32.mrf.mxu0
  %v359 = vadd.f32 0.0, %v358
  %360 = vdwg.mxu0
  %v361 = vadd.f32 %v58, %v359
  %v362 = vxor.u32 %v361, 2147483648
  %v363 = vmul.f32 %v362, 1.442695
  %v364 = vpow.pop %v363
  %v365 = vadd.f32 %v364, 1.0
  %v366 = vrcp.pop %v365
  %v367 = vmul.f32 %v365, %v366
  %v368 = vsub.f32 1.0, %v367
  %v369 = vmul.f32 %v366, %v368
  %v370 = vadd.f32 %v366, %v369
  %vm371 = vweird.f32 %v365
  %vm372 = vweird.f32 %v366
  %vm373 = vmor %vm371, %vm372
  %v374 = vsel %vm373, %v366, %v370
  %v375 = vand.u32 2147483647, %v365
  %vm376 = vcmp.eq.f32.partialorder %v375, 8.507059e+37
  %v377 = vand.u32 %v365, 2147483648
  %v378 = vor.u32 1.1754944e-38, %v377
  %v379 = vsel %vm376, %v378, %v374
  %v380 = vmul.f32 1.0, %v379
  %v381 = vtanh.pop %v361
  %v383 = vrot.slane %v328, 6
  %v385 = vmul.f32 %v380, %v383
  %387 = vrot.lane.b32.xlu0 %v381, 64
  %v388 = vpop.permute.xlu0 %387
  %v390 = vmul.f32 %v380, %v388
  %392 = vrot.lane.b32.xlu0 %v390, 32
  %v393 = vpop.permute.xlu0 %392
  %v395 = vadd.f32 %v385, %v393
  %v396 = vtanh.pop %v395
  %398 = vrot.lane.b32.xlu0 %v396, 64
  %v399 = vpop.permute.xlu0 %398
  %v401 = vmul.f32 %v380, %v399
  %403 = vrot.lane.b32.xlu0 %v401, 32
  %v404 = vpop.permute.xlu0 %403
  %v405 = vsel %vm64, %v404, 0
  %407 = vmatpush.msra.mxu0 0.0
  %408 = vmatpush.msra.mxu0 0.0
  %409 = vmatpush.msra.mxu0 0.0
  %410 = vmatpush.msra.mxu0 0.0
  %411 = vmatpush.msra.mxu0 0.0
  %412 = vmatpush.msra.mxu0 0.0
  %413 = vmatpush.msra.mxu0 0.0
  %414 = vmatpush.msra.mxu0 0.0
  %415 = vmatpush.msra.mxu0 0.0
  %416 = vmatpush.msra.mxu0 0.0
  %417 = vmatpush.msra.mxu0 0.0
  %418 = vmatpush.msra.mxu0 0.0
  %419 = vmatpush.msra.mxu0 %v63
  %420 = vmatpush.msra.mxu0 %v62
  %421 = vmatpush.msra.mxu0 %v61
  %422 = vmatpush.msra.mxu0 %v60
  %423 = vmatmul.f32.gmra.mxu0 %v405
  %v424 = vpop.f32.mrf.mxu0
  %v425 = vadd.f32 0.0, %v424
  %426 = vdwg.mxu0
  %v428 = vrot.slane %v425, 6
  %v430 = vadd.f32 %v58, %v428
  %v431 = vxor.u32 %v430, 2147483648
  %v432 = vmul.f32 %v431, 1.442695
  %v433 = vpow.pop %v432
  %v434 = vadd.f32 %v433, 1.0
  %v435 = vrcp.pop %v434
  %v436 = vmul.f32 %v434, %v435
  %v437 = vsub.f32 1.0, %v436
  %v438 = vmul.f32 %v435, %v437
  %v439 = vadd.f32 %v435, %v438
  %vm440 = vweird.f32 %v434
  %vm441 = vweird.f32 %v435
  %vm442 = vmor %vm440, %vm441
  %v443 = vsel %vm442, %v435, %v439
  %v444 = vand.u32 2147483647, %v434
  %vm445 = vcmp.eq.f32.partialorder %v444, 8.507059e+37
  %v446 = vand.u32 %v434, 2147483648
  %v447 = vor.u32 1.1754944e-38, %v446
  %v448 = vsel %vm445, %v447, %v443
  %v449 = vmul.f32 1.0, %v448
  %v450 = vtanh.pop %v430
  %v452 = vrot.slane %v395, 6
  %v454 = vmul.f32 %v449, %v452
  %456 = vrot.lane.b32.xlu0 %v450, 64
  %v457 = vpop.permute.xlu0 %456
  %v459 = vmul.f32 %v449, %v457
  %461 = vrot.lane.b32.xlu0 %v459, 32
  %v462 = vpop.permute.xlu0 %461
  %v464 = vadd.f32 %v454, %v462
  %v465 = vtanh.pop %v464
  %467 = vrot.lane.b32.xlu0 %v465, 64
  %v468 = vpop.permute.xlu0 %467
  %v470 = vmul.f32 %v449, %v468
  %v472 = vrot.slane %v470, 2
  %473 = vrot.lane.b32.xlu0 %v472, 32
  %v474 = vpop.permute.xlu0 %473
  %v475 = vsel %vm64, %v474, 0
  %477 = vmatpush.msra.mxu0 0.0
  %478 = vmatpush.msra.mxu0 0.0
  %479 = vmatpush.msra.mxu0 0.0
  %480 = vmatpush.msra.mxu0 0.0
  %481 = vmatpush.msra.mxu0 0.0
  %482 = vmatpush.msra.mxu0 0.0
  %483 = vmatpush.msra.mxu0 0.0
  %484 = vmatpush.msra.mxu0 0.0
  %485 = vmatpush.msra.mxu0 0.0
  %486 = vmatpush.msra.mxu0 0.0
  %487 = vmatpush.msra.mxu0 0.0
  %488 = vmatpush.msra.mxu0 0.0
  %489 = vmatpush.msra.mxu0 %v63
  %490 = vmatpush.msra.mxu0 %v62
  %491 = vmatpush.msra.mxu0 %v61
  %492 = vmatpush.msra.mxu0 %v60
  %493 = vmatmul.f32.gmra.mxu0 %v475
  %v494 = vpop.f32.mrf.mxu0
  %v495 = vadd.f32 0.0, %v494
  %496 = vdwg.mxu0
  %v498 = vrot.slane %v495, 4
  %v500 = vadd.f32 %v58, %v498
  %v501 = vxor.u32 %v500, 2147483648
  %v502 = vmul.f32 %v501, 1.442695
  %v503 = vpow.pop %v502
  %v504 = vadd.f32 %v503, 1.0
  %v505 = vrcp.pop %v504
  %v506 = vmul.f32 %v504, %v505
  %v507 = vsub.f32 1.0, %v506
  %v508 = vmul.f32 %v505, %v507
  %v509 = vadd.f32 %v505, %v508
  %vm510 = vweird.f32 %v504
  %vm511 = vweird.f32 %v505
  %vm512 = vmor %vm510, %vm511
  %v513 = vsel %vm512, %v505, %v509
  %v514 = vand.u32 2147483647, %v504
  %vm515 = vcmp.eq.f32.partialorder %v514, 8.507059e+37
  %v516 = vand.u32 %v504, 2147483648
  %v517 = vor.u32 1.1754944e-38, %v516
  %v518 = vsel %vm515, %v517, %v513
  %v519 = vmul.f32 1.0, %v518
  %v520 = vtanh.pop %v500
  %v522 = vrot.slane %v464, 6
  %v524 = vmul.f32 %v519, %v522
  %526 = vrot.lane.b32.xlu0 %v520, 64
  %v527 = vpop.permute.xlu0 %526
  %v529 = vmul.f32 %v519, %v527
  %531 = vrot.lane.b32.xlu0 %v529, 32
  %v532 = vpop.permute.xlu0 %531
  %v534 = vadd.f32 %v524, %v532
  %v535 = vtanh.pop %v534
  %537 = vrot.lane.b32.xlu0 %v535, 64
  %v538 = vpop.permute.xlu0 %537
  %v540 = vmul.f32 %v519, %v538
  %v542 = vrot.slane %v540, 4
  %543 = vrot.lane.b32.xlu0 %v542, 32
  %v544 = vpop.permute.xlu0 %543
  %v545 = vsel %vm64, %v544, 0
  %547 = vmatpush.msra.mxu0 0.0
  %548 = vmatpush.msra.mxu0 0.0
  %549 = vmatpush.msra.mxu0 0.0
  %550 = vmatpush.msra.mxu0 0.0
  %551 = vmatpush.msra.mxu0 0.0
  %552 = vmatpush.msra.mxu0 0.0
  %553 = vmatpush.msra.mxu0 0.0
  %554 = vmatpush.msra.mxu0 0.0
  %555 = vmatpush.msra.mxu0 0.0
  %556 = vmatpush.msra.mxu0 0.0
  %557 = vmatpush.msra.mxu0 0.0
  %558 = vmatpush.msra.mxu0 0.0
  %559 = vmatpush.msra.mxu0 %v63
  %560 = vmatpush.msra.mxu0 %v62
  %561 = vmatpush.msra.mxu0 %v61
  %562 = vmatpush.msra.mxu0 %v60
  %563 = vmatmul.f32.gmra.mxu0 %v545
  %v564 = vpop.f32.mrf.mxu0
  %v565 = vadd.f32 0.0, %v564
  %566 = vdwg.mxu0
  %v568 = vrot.slane %v565, 2
  %v570 = vadd.f32 %v58, %v568
  %v571 = vxor.u32 %v570, 2147483648
  %v572 = vmul.f32 %v571, 1.442695
  %v573 = vpow.pop %v572
  %v574 = vadd.f32 %v573, 1.0
  %v575 = vrcp.pop %v574
  %v576 = vmul.f32 %v574, %v575
  %v577 = vsub.f32 1.0, %v576
  %v578 = vmul.f32 %v575, %v577
  %v579 = vadd.f32 %v575, %v578
  %vm580 = vweird.f32 %v574
  %vm581 = vweird.f32 %v575
  %vm582 = vmor %vm580, %vm581
  %v583 = vsel %vm582, %v575, %v579
  %v584 = vand.u32 2147483647, %v574
  %vm585 = vcmp.eq.f32.partialorder %v584, 8.507059e+37
  %v586 = vand.u32 %v574, 2147483648
  %v587 = vor.u32 1.1754944e-38, %v586
  %v588 = vsel %vm585, %v587, %v583
  %v589 = vmul.f32 1.0, %v588
  %v590 = vtanh.pop %v570
  %v592 = vrot.slane %v534, 6
  %v594 = vmul.f32 %v589, %v592
  %596 = vrot.lane.b32.xlu0 %v590, 64
  %v597 = vpop.permute.xlu0 %596
  %v599 = vmul.f32 %v589, %v597
  %601 = vrot.lane.b32.xlu0 %v599, 32
  %v602 = vpop.permute.xlu0 %601
  %v604 = vadd.f32 %v594, %v602
  %v605 = vtanh.pop %v604
  %607 = vrot.lane.b32.xlu0 %v605, 64
  %v608 = vpop.permute.xlu0 %607
  %v610 = vmul.f32 %v589, %v608
  %v611 = vld [vmem:[%s4] sm:$0xff]
  %v612 = vld [vmem:[%s4 + $0x8] sm:$0xff]
  %v613 = vld [vmem:[%s4 + $0x10] sm:$0xff]
  %v614 = vld [vmem:[%s4 + $0x18] sm:$0xff]
  %v615 = vld [vmem:[%s5] sm:$0x1]
  %v617 = vperm.slane %v615, 0
  %v620 = vrot.slane %v610, 6
  %621 = vrot.lane.b32.xlu0 %v620, 32
  %v622 = vpop.permute.xlu0 %621
  %v623 = vsel %vm64, %v622, 0
  %625 = vmatpush.msra.mxu0 0.0
  %626 = vmatpush.msra.mxu0 0.0
  %627 = vmatpush.msra.mxu0 0.0
  %628 = vmatpush.msra.mxu0 0.0
  %629 = vmatpush.msra.mxu0 0.0
  %630 = vmatpush.msra.mxu0 0.0
  %631 = vmatpush.msra.mxu0 0.0
  %632 = vmatpush.msra.mxu0 0.0
  %633 = vmatpush.msra.mxu0 0.0
  %634 = vmatpush.msra.mxu0 0.0
  %635 = vmatpush.msra.mxu0 0.0
  %636 = vmatpush.msra.mxu0 0.0
  %637 = vmatpush.msra.mxu0 %v614
  %638 = vmatpush.msra.mxu0 %v613
  %639 = vmatpush.msra.mxu0 %v612
  %640 = vmatpush.msra.mxu0 %v611
  %641 = vmatmul.f32.gmra.mxu0 %v623
  %v642 = vpop.f32.mrf.mxu0
  %v643 = vadd.f32 %v617, %v642
  %644 = vdwg.mxu0
  %v645 = vlaneseq
  %v646 = vand.u32 %v645, 127
  %vm647 = vcmp.lt.s32.totalorder %v646, 8
  %v648 = vmul.f32 %v643, 1.442695
  %v649 = vpow.pop %v648
  %v650 = vsel %vm647, %v643, %v649
  %vm651 = vcmask 123904
  %652 = vst.msk [vmem:[%s6] sm:$0x3] %vm651, %v650
  // Predicated region
  $region26: #{latent_action_lstm_forward.1} parent=0 // pred_check
    _
  $region27: #{latent_action_lstm_forward.1} parent=0 // pred_check_branch
    %654 = sbr.rel (0) target = $region29
  $region28: #{latent_action_lstm_forward.1} parent=0 // pred_region
    _
  $region29: #{latent_action_lstm_forward.1} parent=0 // pred_fallthru
    _
  // Predicated region
  $region30: #{latent_action_lstm_forward.1} parent=0 // pred_check
    _
  $region31: #{latent_action_lstm_forward.1} parent=0 // pred_check_branch
    %656 = sbr.rel (0) target = $region33
  $region32: #{latent_action_lstm_forward.1} parent=0 // pred_region
    _
  $region33: #{latent_action_lstm_forward.1} parent=0 // pred_fallthru
    _

</llo_original>
